<compile_context>
chip_gen: v6e
topology: v6e:2x2x1
jax: 0.10.0
libtpu: 0.0.40
codegen_flags: <defaults>
</compile_context>

<pallas_src>
import jax
import jax.numpy as jnp
from jax.experimental import pallas as pl
from jax.experimental.pallas import tpu as pltpu

IN_DIM = 41
H1 = 64
H2 = 64
OUT_DIM = 40

# Keep total requested VMEM well under v7x's 64 MiB physical per-TC VMEM.
_MAX_BATCH_TILE = 8192
_VMEM_LIMIT_BYTES = 48 * 1024 * 1024


def _round_up(n, m):
    return ((n + m - 1) // m) * m


def _mlp_kernel(x_ref, w1_ref, b1_ref, w2_ref, b2_ref, w3_ref, b3_ref, o_ref):
    """Fused 3x (bf16 matmul w/ f32 accumulate + f32 bias + ReLU) for one batch tile."""
    # Operands to the MXU are bf16; accumulation is f32 (preferred_element_type).
    x = x_ref[...].astype(jnp.bfloat16)  # no-op if the input is already bf16

    # Layer 1: (TB, 41) @ (41, 64) + (1, 64), ReLU, then keep only the bf16 copy live.
    h = jnp.dot(x, w1_ref[...], preferred_element_type=jnp.float32) + b1_ref[...]
    h = jnp.maximum(h, 0.0).astype(jnp.bfloat16)

    # Layer 2: (TB, 64) @ (64, 64) + (1, 64), ReLU, bf16 downcast in the epilogue.
    h = jnp.dot(h, w2_ref[...], preferred_element_type=jnp.float32) + b2_ref[...]
    h = jnp.maximum(h, 0.0).astype(jnp.bfloat16)

    # Layer 3: (TB, 64) @ (64, 40) + (1, 40), ReLU.
    y = jnp.dot(h, w3_ref[...], preferred_element_type=jnp.float32) + b3_ref[...]
    y = jnp.maximum(y, 0.0)

    o_ref[...] = y.astype(o_ref.dtype)


def ad_model_forward(x, params, *, batch_tile=_MAX_BATCH_TILE, out_dtype=None):
    """x: (B, 41) float32 or bfloat16 -> (B, 40) in `out_dtype` (defaults to x.dtype).

    batch_tile is a tuning knob (clamped to <= 8192 to respect v7x VMEM); B is padded
    to a multiple of the effective tile and the padded rows are sliced off the output.
    """
    w1, b1, w2, b2, w3, b3 = params
    B = x.shape[0]
    if out_dtype is None:
        out_dtype = x.dtype

    # Cast matmul weights to bf16 once (f32 accumulation happens in-kernel).
    w1b = w1.astype(jnp.bfloat16)
    w2b = w2.astype(jnp.bfloat16)
    w3b = w3.astype(jnp.bfloat16)

    # Effective tile: multiple of 8 (sublane tile), at most batch_tile (clamped), and
    # small enough that the grid has >=4 steps (>=2 per v7x TensorCore) for large B so
    # input/output DMA double-buffering stays hidden on both cores.
    batch_tile = max(8, min(_round_up(batch_tile, 8), _MAX_BATCH_TILE))
    tb = min(batch_tile, max(8, _round_up(-(-B // 4), 8)))
    padded_b = _round_up(B, tb)
    if padded_b != B:
        x = jnp.pad(x, ((0, padded_b - B), (0, 0)))
    grid = (padded_b // tb,)

    # Weights/biases are tiny; constant index_map (block == full array) keeps them
    # resident in VMEM across grid steps (no per-step re-DMA).
    full = lambda shape: pl.BlockSpec(shape, lambda i: (0,) * len(shape))

    out = pl.pallas_call(
        _mlp_kernel,
        out_shape=jax.ShapeDtypeStruct((padded_b, OUT_DIM), out_dtype),
        grid_spec=pltpu.PrefetchScalarGridSpec(
            num_scalar_prefetch=0,
            grid=grid,
            in_specs=[
                # NOTE: if an xprof trace shows exposed DMA at tile boundaries, add
                # pipeline_mode=pl.Buffered(3) here (VMEM headroom is ample).
                pl.BlockSpec((tb, IN_DIM), lambda i: (i, 0)),  # x tile
                full((IN_DIM, H1)),    # w1 (bf16)
                full((1, H1)),         # b1 (f32)
                full((H1, H2)),        # w2 (bf16)
                full((1, H2)),         # b2 (f32)
                full((H2, OUT_DIM)),   # w3 (bf16)
                full((1, OUT_DIM)),    # b3 (f32)
            ],
            out_specs=pl.BlockSpec((tb, OUT_DIM), lambda i: (i, 0)),
        ),
        compiler_params=pltpu.CompilerParams(
            dimension_semantics=("parallel",),
            # Explicit budget: above v5e's 16 MiB default scoped limit (needed for
            # tb > ~4K rows), well under v7x's 64 MiB physical VMEM.
            vmem_limit_bytes=_VMEM_LIMIT_BYTES,
        ),
    )(x, w1b, b1, w2b, b2, w3b, b3)

    return out[:B]


def init_params(key):
    """Deterministic init mimicking torch.nn.Linear: U(-1/sqrt(fan_in), 1/sqrt(fan_in))."""
    def linear_init(k, fan_in, fan_out):
        kw, kb = jax.random.split(k)
        bound = 1.0 / jnp.sqrt(fan_in)
        # Stored as (in, out) so the kernel computes x @ W (== torch's x @ W.T).
        w = jax.random.uniform(kw, (fan_in, fan_out), jnp.float32, -bound, bound)
        b = jax.random.uniform(kb, (1, fan_out), jnp.float32, -bound, bound)
        return w, b

    k1, k2, k3 = jax.random.split(key, 3)
    w1, b1 = linear_init(k1, IN_DIM, H1)
    w2, b2 = linear_init(k2, H1, H2)
    w3, b3 = linear_init(k3, H2, OUT_DIM)
    return (w1, b1, w2, b2, w3, b3)


def _reference_forward(x, params):
    w1, b1, w2, b2, w3, b3 = params
    h = jnp.maximum(x @ w1 + b1, 0.0)
    h = jnp.maximum(h @ w2 + b2, 0.0)
    return jnp.maximum(h @ w3 + b3, 0.0)


if __name__ == "__main__":
    key = jax.random.PRNGKey(0)
    kx, kp = jax.random.split(key)
    params = init_params(kp)

    # f32 path: B=8 exact tile, B=13 pad/slice, B=100 multi-step grid (tb=32, 4 steps).
    for B in (8, 13, 100):
        x = jax.random.normal(kx, (B, IN_DIM), jnp.float32)
        out = jax.block_until_ready(ad_model_forward(x, params))
        ref = _reference_forward(x, params)
        assert out.shape == (B, OUT_DIM), out.shape
        assert out.dtype == jnp.float32, out.dtype
        # bf16 matmul operands (f32 accumulate) -> loosened tolerance vs f32 reference.
        assert jnp.allclose(out, ref, atol=5e-2, rtol=5e-2), "mismatch vs pure-JAX reference"

    # bf16 input/output path (halves HBM traffic in the mem-bound regime).
    B = 16
    x32 = jax.random.normal(kx, (B, IN_DIM), jnp.float32)
    x16 = x32.astype(jnp.bfloat16)
    out16 = jax.block_until_ready(ad_model_forward(x16, params))
    ref = _reference_forward(x32, params)
    assert out16.shape == (B, OUT_DIM) and out16.dtype == jnp.bfloat16
    assert jnp.allclose(out16.astype(jnp.float32), ref, atol=1e-1, rtol=1e-1), \
        "bf16 path mismatch vs pure-JAX reference"

    print("KERNEL_OK")
</pallas_src>

<mosaic_0001>
module attributes {stable_mosaic.version = 11 : i64} {
  func.func @_mlp_kernel(%arg0: i32, %arg1: memref<8x41xf32, #tpu.memory_space<vmem>>, %arg2: memref<41x64xbf16, #tpu.memory_space<vmem>>, %arg3: memref<1x64xf32, #tpu.memory_space<vmem>>, %arg4: memref<64x64xbf16, #tpu.memory_space<vmem>>, %arg5: memref<1x64xf32, #tpu.memory_space<vmem>>, %arg6: memref<64x40xbf16, #tpu.memory_space<vmem>>, %arg7: memref<1x40xf32, #tpu.memory_space<vmem>>, %arg8: memref<8x40xf32, #tpu.memory_space<vmem>>) attributes {dimension_semantics = [#tpu.dimension_semantics<parallel>], iteration_bounds = array<i64: 1>, scalar_prefetch = 0 : i64, scratch_operands = 0 : i64, tpu.core_type = #tpu.core_type<tc>, window_params = [{transform_indices = @transform_0, window_bounds = array<i64: 8, 41>}, {pipeline_mode = #tpu.pipeline_mode<synchronous>, transform_indices = @transform_1, window_bounds = array<i64: 41, 64>}, {pipeline_mode = #tpu.pipeline_mode<synchronous>, transform_indices = @transform_2, window_bounds = array<i64: 1, 64>}, {pipeline_mode = #tpu.pipeline_mode<synchronous>, transform_indices = @transform_3, window_bounds = array<i64: 64, 64>}, {pipeline_mode = #tpu.pipeline_mode<synchronous>, transform_indices = @transform_4, window_bounds = array<i64: 1, 64>}, {pipeline_mode = #tpu.pipeline_mode<synchronous>, transform_indices = @transform_5, window_bounds = array<i64: 64, 40>}, {pipeline_mode = #tpu.pipeline_mode<synchronous>, transform_indices = @transform_6, window_bounds = array<i64: 1, 40>}, {transform_indices = @transform_7, window_bounds = array<i64: 8, 40>}]} {
    %c0 = arith.constant 0 : index
    %c0_0 = arith.constant 0 : index
    %0 = vector.load %arg1[%c0, %c0_0] : memref<8x41xf32, #tpu.memory_space<vmem>>, vector<8x41xf32>
    %1 = arith.truncf %0 : vector<8x41xf32> to vector<8x41xbf16>
    %c0_1 = arith.constant 0 : index
    %c0_2 = arith.constant 0 : index
    %2 = vector.load %arg2[%c0_1, %c0_2] : memref<41x64xbf16, #tpu.memory_space<vmem>>, vector<41x64xbf16>
    %cst = arith.constant dense<0.000000e+00> : vector<8x64xf32>
    %3 = tpu.matmul %1, %2, %cst {dimension_numbers = #tpu.dot_dimension_numbers<[1], [0], [0], [1], [0, 0, 1, 1], [], []>} : vector<8x41xbf16>, vector<41x64xbf16>, vector<8x64xf32> -> vector<8x64xf32>
    %c0_3 = arith.constant 0 : index
    %c0_4 = arith.constant 0 : index
    %4 = vector.load %arg3[%c0_3, %c0_4] : memref<1x64xf32, #tpu.memory_space<vmem>>, vector<1x64xf32>
    %5 = vector.broadcast %4 : vector<1x64xf32> to vector<8x64xf32>
    %6 = arith.addf %3, %5 : vector<8x64xf32>
    %cst_5 = arith.constant 0.000000e+00 : f32
    %7 = vector.broadcast %cst_5 : f32 to vector<8x64xf32>
    %8 = arith.maximumf %6, %7 : vector<8x64xf32>
    %9 = arith.truncf %8 : vector<8x64xf32> to vector<8x64xbf16>
    %c0_6 = arith.constant 0 : index
    %c0_7 = arith.constant 0 : index
    %10 = vector.load %arg4[%c0_6, %c0_7] : memref<64x64xbf16, #tpu.memory_space<vmem>>, vector<64x64xbf16>
    %cst_8 = arith.constant dense<0.000000e+00> : vector<8x64xf32>
    %11 = tpu.matmul %9, %10, %cst_8 {dimension_numbers = #tpu.dot_dimension_numbers<[1], [0], [0], [1], [0, 0, 1, 1], [], []>} : vector<8x64xbf16>, vector<64x64xbf16>, vector<8x64xf32> -> vector<8x64xf32>
    %c0_9 = arith.constant 0 : index
    %c0_10 = arith.constant 0 : index
    %12 = vector.load %arg5[%c0_9, %c0_10] : memref<1x64xf32, #tpu.memory_space<vmem>>, vector<1x64xf32>
    %13 = vector.broadcast %12 : vector<1x64xf32> to vector<8x64xf32>
    %14 = arith.addf %11, %13 : vector<8x64xf32>
    %cst_11 = arith.constant 0.000000e+00 : f32
    %15 = vector.broadcast %cst_11 : f32 to vector<8x64xf32>
    %16 = arith.maximumf %14, %15 : vector<8x64xf32>
    %17 = arith.truncf %16 : vector<8x64xf32> to vector<8x64xbf16>
    %c0_12 = arith.constant 0 : index
    %c0_13 = arith.constant 0 : index
    %18 = vector.load %arg6[%c0_12, %c0_13] : memref<64x40xbf16, #tpu.memory_space<vmem>>, vector<64x40xbf16>
    %cst_14 = arith.constant dense<0.000000e+00> : vector<8x40xf32>
    %19 = tpu.matmul %17, %18, %cst_14 {dimension_numbers = #tpu.dot_dimension_numbers<[1], [0], [0], [1], [0, 0, 1, 1], [], []>} : vector<8x64xbf16>, vector<64x40xbf16>, vector<8x40xf32> -> vector<8x40xf32>
    %c0_15 = arith.constant 0 : index
    %c0_16 = arith.constant 0 : index
    %20 = vector.load %arg7[%c0_15, %c0_16] : memref<1x40xf32, #tpu.memory_space<vmem>>, vector<1x40xf32>
    %21 = vector.broadcast %20 : vector<1x40xf32> to vector<8x40xf32>
    %22 = arith.addf %19, %21 : vector<8x40xf32>
    %cst_17 = arith.constant 0.000000e+00 : f32
    %23 = vector.broadcast %cst_17 : f32 to vector<8x40xf32>
    %24 = arith.maximumf %22, %23 : vector<8x40xf32>
    %c0_18 = arith.constant 0 : index
    %c0_19 = arith.constant 0 : index
    %25 = vector.load %arg8[%c0_18, %c0_19] : memref<8x40xf32, #tpu.memory_space<vmem>>, vector<8x40xf32>
    tpu.vector_store %arg8[%c0_18, %c0_19], %24 {strides = array<i32>} : memref<8x40xf32, #tpu.memory_space<vmem>>, vector<8x40xf32>,
    return
  }
  func.func @transform_0(%arg0: i32) -> (i32, i32) {
    %c0_i32 = arith.constant 0 : i32
    %c0_i32_0 = arith.constant 0 : i32
    return %arg0, %c0_i32 : i32, i32
  }
  func.func @transform_1(%arg0: i32) -> (i32, i32) {
    %c0_i32 = arith.constant 0 : i32
    %c0_i32_0 = arith.constant 0 : i32
    %c0_i32_1 = arith.constant 0 : i32
    return %c0_i32, %c0_i32_0 : i32, i32
  }
  func.func @transform_2(%arg0: i32) -> (i32, i32) {
    %c0_i32 = arith.constant 0 : i32
    %c0_i32_0 = arith.constant 0 : i32
    %c0_i32_1 = arith.constant 0 : i32
    return %c0_i32, %c0_i32_0 : i32, i32
  }
  func.func @transform_3(%arg0: i32) -> (i32, i32) {
    %c0_i32 = arith.constant 0 : i32
    %c0_i32_0 = arith.constant 0 : i32
    %c0_i32_1 = arith.constant 0 : i32
    return %c0_i32, %c0_i32_0 : i32, i32
  }
  func.func @transform_4(%arg0: i32) -> (i32, i32) {
    %c0_i32 = arith.constant 0 : i32
    %c0_i32_0 = arith.constant 0 : i32
    %c0_i32_1 = arith.constant 0 : i32
    return %c0_i32, %c0_i32_0 : i32, i32
  }
  func.func @transform_5(%arg0: i32) -> (i32, i32) {
    %c0_i32 = arith.constant 0 : i32
    %c0_i32_0 = arith.constant 0 : i32
    %c0_i32_1 = arith.constant 0 : i32
    return %c0_i32, %c0_i32_0 : i32, i32
  }
  func.func @transform_6(%arg0: i32) -> (i32, i32) {
    %c0_i32 = arith.constant 0 : i32
    %c0_i32_0 = arith.constant 0 : i32
    %c0_i32_1 = arith.constant 0 : i32
    return %c0_i32, %c0_i32_0 : i32, i32
  }
  func.func @transform_7(%arg0: i32) -> (i32, i32) {
    %c0_i32 = arith.constant 0 : i32
    %c0_i32_0 = arith.constant 0 : i32
    return %arg0, %c0_i32 : i32, i32
  }
}

</mosaic_0001>

<llo_original>
// kernel: tpu_custom_call.1
$region0: #{tpu_custom_call.1}
  #allocation0 [shape = 'u32[]', space=smem, size = 0x4, offset = 0x4, fixed_abs, tag = 'smem constant byte address 0x4 - core index']
  #allocation1 [shape = 'u32[144,128]{1,0:T(1,128)}', space=vmem, size = 0x12000, scoped, tag = 'internal scratch']
  %s0 = inlined_call_operand.hbm [shape: f32[8,41], index: 0, kind: input, shape index: {}]
  %s1 = inlined_call_operand.vmem [shape: bf16[41,64], index: 1, kind: input, shape index: {}]
  %s2 = inlined_call_operand.vmem [shape: f32[1,64], index: 2, kind: input, shape index: {}]
  %s3 = inlined_call_operand.vmem [shape: bf16[64,64], index: 3, kind: input, shape index: {}]
  %s4 = inlined_call_operand.vmem [shape: f32[1,64], index: 4, kind: input, shape index: {}]
  %s5 = inlined_call_operand.vmem [shape: bf16[64,40], index: 5, kind: input, shape index: {}]
  %s6 = inlined_call_operand.vmem [shape: f32[1,40], index: 6, kind: input, shape index: {}]
  %s7 = inlined_call_operand.hbm [shape: f32[8,40], index: 7, kind: output, shape index: {}]
  %s8 = sld [smem:[#allocation0]]
  $region42: #{tpu_custom_call.1} parent=0
    _
  %s10 = ssub.s32 1, %s8
  %s11 = scalar_select 0, %s10, %s8
  $region1: #{tpu_custom_call.1} parent=0
    #allocation2 [shape = 'u8[4096]{0}', space=vmem, size = 0x1000, scoped, tag = 'input window, operand 0, single buffered']
    #allocation3 [shape = 's32[1]{0}', space=sflag, size = 0x4, scoped, tag = 'scoped memory for tpu_custom_call.1']
    #allocation4 [shape = 's32[1]{0}', space=sflag, size = 0x4, scoped, tag = 'scoped memory for tpu_custom_call.1']
    #allocation5 [shape = 'u8[4096]{0}', space=vmem, size = 0x1000, scoped, tag = 'output window, operand 0, single buffered']
    %12 = vsyncpa [#allocation3], 0
    %13 = vsyncpa [#allocation4], 0
    // Predicated region
    $region2: #{tpu_custom_call.1} parent=1 // pred_check
      _
    $region3: #{tpu_custom_call.1} parent=1 // pred_check_branch
      %15 = sbr.rel (0) target = $region5
    $region4: #{tpu_custom_call.1} parent=1 // pred_region
      %s17 = ssub.s32 128, 128
      %18 = vsyncadd [#allocation3], %s17
      %s20 = sshll.u32 [#allocation2], 4
      %s21 = int_to_ptr.vmem [resolvable:$true] %s20
      %23 = dma.hbm_to_vmem [thread:$0]  %s0, 128, %s21, [#allocation3]
    $region5: #{tpu_custom_call.1} parent=1 // pred_fallthru
      _
    // Predicated region
    $region6: #{tpu_custom_call.1} parent=1 // pred_check
      _
    $region7: #{tpu_custom_call.1} parent=1 // pred_check_branch
      %25 = sbr.rel (0) target = $region9
    $region8: #{tpu_custom_call.1} parent=1 // pred_region
      _
    $region9: #{tpu_custom_call.1} parent=1 // pred_fallthru
      _
    // Predicated region
    $region10: #{tpu_custom_call.1} parent=1 // pred_check
      _
    $region11: #{tpu_custom_call.1} parent=1 // pred_check_branch
      %27 = sbr.rel (0) target = $region13
    $region12: #{tpu_custom_call.1} parent=1 // pred_region
      _
    $region13: #{tpu_custom_call.1} parent=1 // pred_fallthru
      _
    // Predicated region
    $region14: #{tpu_custom_call.1} parent=1 // pred_check
      _
    $region15: #{tpu_custom_call.1} parent=1 // pred_check_branch
      %29 = sbr.rel (0) target = $region17
    $region16: #{tpu_custom_call.1} parent=1 // pred_region
      _
    $region17: #{tpu_custom_call.1} parent=1 // pred_fallthru
      _
    // Predicated region
    $region18: #{tpu_custom_call.1} parent=1 // pred_check
      _
    $region19: #{tpu_custom_call.1} parent=1 // pred_check_branch
      %31 = sbr.rel (0) target = $region21
    $region20: #{tpu_custom_call.1} parent=1 // pred_region
      _
    $region21: #{tpu_custom_call.1} parent=1 // pred_fallthru
      _
    // Predicated region
    $region22: #{tpu_custom_call.1} parent=1 // pred_check
      _
    $region23: #{tpu_custom_call.1} parent=1 // pred_check_branch
      %33 = sbr.rel (0) target = $region25
    $region24: #{tpu_custom_call.1} parent=1 // pred_region
      _
    $region25: #{tpu_custom_call.1} parent=1 // pred_fallthru
      _
    // Predicated region
    $region26: #{tpu_custom_call.1} parent=1 // pred_check
      _
    $region27: #{tpu_custom_call.1} parent=1 // pred_check_branch
      %35 = sbr.rel (0) target = $region29
    $region28: #{tpu_custom_call.1} parent=1 // pred_region
      _
    $region29: #{tpu_custom_call.1} parent=1 // pred_fallthru
      _
    // Predicated region
    $region30: #{tpu_custom_call.1} parent=1 // pred_check
      _
    $region31: #{tpu_custom_call.1} parent=1 // pred_check_branch
      %37 = sbr.rel (0) target = $region33
    $region32: #{tpu_custom_call.1} parent=1 // pred_region
      %38 = dma.done [#allocation3], 128
    $region33: #{tpu_custom_call.1} parent=1 // pred_fallthru
      _
    %v40 = vld [vmem:[#allocation2] sm:$0xff]
    %v41 = vpack.c.bf16 %v40, %v40
    %v42 = vld [vmem:[%s1] sm:$0xf]
    %v43 = vld [vmem:[%s1 + $0x4] sm:$0xf]
    %v44 = vld [vmem:[%s1 + $0x8] sm:$0xf]
    %v45 = vld [vmem:[%s1 + $0xc] sm:$0xf]
    %v46 = vld [vmem:[%s1 + $0x10] sm:$0xf]
    %v47 = vld [vmem:[%s1 + $0x14] sm:$0x1]
    %v48 = vld [vmem:[%s2] sm:$0x1]
    %v50 = vlaneseq
    %v51 = vshrl.u32 %v50, 7
    %v52 = vsub.s32 0, %v51
    %v53 = vrot.slane %v48, %v52
    %v61 = vunpack.c.l.b16 %v42
    %v62 = vunpack.c.l.b16 %v43
    %v63 = vunpack.c.l.b16 %v44
    %v64 = vunpack.c.l.b16 %v45
    %v65 = vunpack.c.l.b16 %v46
    %v66 = vunpack.c.l.b16 %v47
    %v67 = vpack.c.b16 %v62, %v61
    %v68 = vpack.c.b16 %v64, %v63
    %v69 = vpack.c.b16 %v66, %v65
    %vm72 = vcmask 334848
    %v74 = vsel %vm72, %v41, 0
    %vm76 = vcmask 1043456
    %vm77 = vcmask 1044480
    %v78 = vsel %vm76, 4294967295, 65535
    %v79 = vsel %vm77, %v78, 0
    %v81 = vand.u32 %v69, %v79
    %83 = vmatprep.subr.bf16.mxu0 0
    %84 = vmatpush1.bf16.msra.mxu0 0
    %85 = vmatprep.subr.bf16.mxu0 0
    %86 = vmatpush1.bf16.msra.mxu0 0
    %87 = vmatprep.subr.bf16.mxu0 0
    %88 = vmatpush1.bf16.msra.mxu0 0
    %89 = vmatprep.subr.bf16.mxu0 0
    %90 = vmatpush1.bf16.msra.mxu0 0
    %91 = vmatprep.subr.bf16.mxu0 0
    %92 = vmatpush1.bf16.msra.mxu0 0
    %93 = vmatprep.subr.bf16.mxu0 0
    %94 = vmatpush1.bf16.msra.mxu0 %v81
    %95 = vmatprep.subr.bf16.mxu0 0
    %96 = vmatpush1.bf16.msra.mxu0 %v68
    %97 = vmatprep.subr.bf16.mxu0 0
    %98 = vmatpush1.bf16.msra.mxu0 %v67
    %99 = vmatprep.subr.bf16.mxu0 0
    %100 = vmatpush2.bf16.msra.mxu0 0
    %101 = vmatprep.subr.bf16.mxu0 0
    %102 = vmatpush2.bf16.msra.mxu0 0
    %103 = vmatprep.subr.bf16.mxu0 0
    %104 = vmatpush2.bf16.msra.mxu0 0
    %105 = vmatprep.subr.bf16.mxu0 0
    %106 = vmatpush2.bf16.msra.mxu0 0
    %107 = vmatprep.subr.bf16.mxu0 0
    %108 = vmatpush2.bf16.msra.mxu0 0
    %109 = vmatprep.subr.bf16.mxu0 0
    %110 = vmatpush2.bf16.msra.mxu0 0
    %111 = vmatprep.subr.bf16.mxu0 0
    %112 = vmatpush2.bf16.msra.mxu0 0
    %113 = vmatprep.subr.bf16.mxu0 0
    %114 = vmatpush2.bf16.msra.mxu0 0
    %115 = vmatprep.mubr.bf16.mxu0 0
    %116 = vmatmul.mubr.bf16.gmra.mxu0 %v74
    %v117 = vpop.f32.mrf.mxu0
    %v118 = vadd.f32 %v53, %v117
    %v119 = vpop.f32.mrf.mxu0
    %v120 = vpop.f32.mrf.mxu0
    %v121 = vpop.f32.mrf.mxu0
    %122 = vdwg.mxu0
    %v123 = vmax.f32 %v118, 0.0
    %v124 = vpack.c.bf16 %v123, %v123
    %v125 = vld [vmem:[%s3] sm:$0xf]
    %v126 = vld [vmem:[%s3 + $0x4] sm:$0xf]
    %v127 = vld [vmem:[%s3 + $0x8] sm:$0xf]
    %v128 = vld [vmem:[%s3 + $0xc] sm:$0xf]
    %v129 = vld [vmem:[%s3 + $0x10] sm:$0xf]
    %v130 = vld [vmem:[%s3 + $0x14] sm:$0xf]
    %v131 = vld [vmem:[%s3 + $0x18] sm:$0xf]
    %v132 = vld [vmem:[%s3 + $0x1c] sm:$0xf]
    %v133 = vld [vmem:[%s4] sm:$0x1]
    %v135 = vlaneseq
    %v136 = vshrl.u32 %v135, 7
    %v137 = vsub.s32 0, %v136
    %v138 = vrot.slane %v133, %v137
    %v148 = vunpack.c.l.b16 %v125
    %v149 = vunpack.c.l.b16 %v126
    %v150 = vunpack.c.l.b16 %v127
    %v151 = vunpack.c.l.b16 %v128
    %v152 = vunpack.c.l.b16 %v129
    %v153 = vunpack.c.l.b16 %v130
    %v154 = vunpack.c.l.b16 %v131
    %v155 = vunpack.c.l.b16 %v132
    %v156 = vpack.c.b16 %v149, %v148
    %v157 = vpack.c.b16 %v151, %v150
    %v158 = vpack.c.b16 %v153, %v152
    %v159 = vpack.c.b16 %v155, %v154
    %vm164 = vcmask 523264
    %v166 = vsel %vm164, %v124, 0
    %168 = vmatprep.subr.bf16.mxu0 0
    %169 = vmatpush1.bf16.msra.mxu0 0
    %170 = vmatprep.subr.bf16.mxu0 0
    %171 = vmatpush1.bf16.msra.mxu0 0
    %172 = vmatprep.subr.bf16.mxu0 0
    %173 = vmatpush1.bf16.msra.mxu0 0
    %174 = vmatprep.subr.bf16.mxu0 0
    %175 = vmatpush1.bf16.msra.mxu0 0
    %176 = vmatprep.subr.bf16.mxu0 0
    %177 = vmatpush1.bf16.msra.mxu0 %v159
    %178 = vmatprep.subr.bf16.mxu0 0
    %179 = vmatpush1.bf16.msra.mxu0 %v158
    %180 = vmatprep.subr.bf16.mxu0 0
    %181 = vmatpush1.bf16.msra.mxu0 %v157
    %182 = vmatprep.subr.bf16.mxu0 0
    %183 = vmatpush1.bf16.msra.mxu0 %v156
    %184 = vmatprep.subr.bf16.mxu0 0
    %185 = vmatpush2.bf16.msra.mxu0 0
    %186 = vmatprep.subr.bf16.mxu0 0
    %187 = vmatpush2.bf16.msra.mxu0 0
    %188 = vmatprep.subr.bf16.mxu0 0
    %189 = vmatpush2.bf16.msra.mxu0 0
    %190 = vmatprep.subr.bf16.mxu0 0
    %191 = vmatpush2.bf16.msra.mxu0 0
    %192 = vmatprep.subr.bf16.mxu0 0
    %193 = vmatpush2.bf16.msra.mxu0 0
    %194 = vmatprep.subr.bf16.mxu0 0
    %195 = vmatpush2.bf16.msra.mxu0 0
    %196 = vmatprep.subr.bf16.mxu0 0
    %197 = vmatpush2.bf16.msra.mxu0 0
    %198 = vmatprep.subr.bf16.mxu0 0
    %199 = vmatpush2.bf16.msra.mxu0 0
    %200 = vmatprep.mubr.bf16.mxu0 0
    %201 = vmatmul.mubr.bf16.gmra.mxu0 %v166
    %v202 = vpop.f32.mrf.mxu0
    %v203 = vadd.f32 %v138, %v202
    %v204 = vpop.f32.mrf.mxu0
    %v205 = vpop.f32.mrf.mxu0
    %v206 = vpop.f32.mrf.mxu0
    %207 = vdwg.mxu0
    %v208 = vmax.f32 %v203, 0.0
    %v209 = vpack.c.bf16 %v208, %v208
    %v210 = vld [vmem:[%s5] sm:$0xf]
    %v211 = vld [vmem:[%s5 + $0x4] sm:$0xf]
    %v212 = vld [vmem:[%s5 + $0x8] sm:$0xf]
    %v213 = vld [vmem:[%s5 + $0xc] sm:$0xf]
    %v214 = vld [vmem:[%s5 + $0x10] sm:$0xf]
    %v215 = vld [vmem:[%s5 + $0x14] sm:$0xf]
    %v216 = vld [vmem:[%s5 + $0x18] sm:$0xf]
    %v217 = vld [vmem:[%s5 + $0x1c] sm:$0xf]
    %v218 = vld [vmem:[%s6] sm:$0x1]
    %v220 = vlaneseq
    %v221 = vshrl.u32 %v220, 7
    %v222 = vsub.s32 0, %v221
    %v223 = vrot.slane %v218, %v222
    %v233 = vunpack.c.l.b16 %v210
    %v234 = vunpack.c.l.b16 %v211
    %v235 = vunpack.c.l.b16 %v212
    %v236 = vunpack.c.l.b16 %v213
    %v237 = vunpack.c.l.b16 %v214
    %v238 = vunpack.c.l.b16 %v215
    %v239 = vunpack.c.l.b16 %v216
    %v240 = vunpack.c.l.b16 %v217
    %v241 = vpack.c.b16 %v234, %v233
    %v242 = vpack.c.b16 %v236, %v235
    %v243 = vpack.c.b16 %v238, %v237
    %v244 = vpack.c.b16 %v240, %v239
    %v250 = vsel %vm164, %v209, 0
    %252 = vmatprep.subr.bf16.mxu0 0
    %253 = vmatpush1.bf16.msra.mxu0 0
    %254 = vmatprep.subr.bf16.mxu0 0
    %255 = vmatpush1.bf16.msra.mxu0 0
    %256 = vmatprep.subr.bf16.mxu0 0
    %257 = vmatpush1.bf16.msra.mxu0 0
    %258 = vmatprep.subr.bf16.mxu0 0
    %259 = vmatpush1.bf16.msra.mxu0 0
    %260 = vmatprep.subr.bf16.mxu0 0
    %261 = vmatpush1.bf16.msra.mxu0 %v244
    %262 = vmatprep.subr.bf16.mxu0 0
    %263 = vmatpush1.bf16.msra.mxu0 %v243
    %264 = vmatprep.subr.bf16.mxu0 0
    %265 = vmatpush1.bf16.msra.mxu0 %v242
    %266 = vmatprep.subr.bf16.mxu0 0
    %267 = vmatpush1.bf16.msra.mxu0 %v241
    %268 = vmatprep.subr.bf16.mxu0 0
    %269 = vmatpush2.bf16.msra.mxu0 0
    %270 = vmatprep.subr.bf16.mxu0 0
    %271 = vmatpush2.bf16.msra.mxu0 0
    %272 = vmatprep.subr.bf16.mxu0 0
    %273 = vmatpush2.bf16.msra.mxu0 0
    %274 = vmatprep.subr.bf16.mxu0 0
    %275 = vmatpush2.bf16.msra.mxu0 0
    %276 = vmatprep.subr.bf16.mxu0 0
    %277 = vmatpush2.bf16.msra.mxu0 0
    %278 = vmatprep.subr.bf16.mxu0 0
    %279 = vmatpush2.bf16.msra.mxu0 0
    %280 = vmatprep.subr.bf16.mxu0 0
    %281 = vmatpush2.bf16.msra.mxu0 0
    %282 = vmatprep.subr.bf16.mxu0 0
    %283 = vmatpush2.bf16.msra.mxu0 0
    %284 = vmatprep.mubr.bf16.mxu0 0
    %285 = vmatmul.mubr.bf16.gmra.mxu0 %v250
    %v286 = vpop.f32.mrf.mxu0
    %v287 = vadd.f32 %v223, %v286
    %v288 = vpop.f32.mrf.mxu0
    %v289 = vpop.f32.mrf.mxu0
    %v290 = vpop.f32.mrf.mxu0
    %291 = vdwg.mxu0
    %v292 = vmax.f32 %v287, 0.0
    %vm293 = vcmask 326656
    %294 = vst.msk [vmem:[#allocation5] sm:$0xff] %vm293, %v292
    // Predicated region
    $region34: #{tpu_custom_call.1} parent=1 // pred_check
      _
    $region35: #{tpu_custom_call.1} parent=1 // pred_check_branch
      %296 = sbr.rel (0) target = $region37
    $region36: #{tpu_custom_call.1} parent=1 // pred_region
      %s298 = ssub.s32 128, 128
      %299 = vsyncadd [#allocation4], %s298
      %s301 = sshll.u32 [#allocation5], 4
      %s302 = int_to_ptr.vmem [resolvable:$true] %s301
      %304 = dma.vmem_to_hbm [thread:$0]  %s302, 128, %s7, [#allocation4]
    $region37: #{tpu_custom_call.1} parent=1 // pred_fallthru
      _
    // Predicated region
    $region38: #{tpu_custom_call.1} parent=1 // pred_check
      _
    $region39: #{tpu_custom_call.1} parent=1 // pred_check_branch
      %306 = sbr.rel (0) target = $region41
    $region40: #{tpu_custom_call.1} parent=1 // pred_region
      %307 = dma.done [#allocation4], 128
    $region41: #{tpu_custom_call.1} parent=1 // pred_fallthru
      _
    %308 = vsyncpa [#allocation3], 1
    %309 = vsyncpa [#allocation4], 1

</llo_original>
